<compile_context>
chip_gen: v5e
topology: v5e:2x2
jax: 0.10.0
libtpu: 0.0.40
codegen_flags: <defaults>
</compile_context>

<pallas_src>
import functools

import jax
import jax.numpy as jnp
from jax.experimental import pallas as pl
from jax.experimental.pallas import tpu as pltpu


def _round_up(x, m):
    return (x + m - 1) // m * m


def _vmem_capacity_bytes():
    """Physical per-core VMEM (v5e/v6e: 128 MiB, v7x: 64 MiB); conservative fallback."""
    try:
        info = pltpu.get_tpu_info()
        cap = getattr(info, "vmem_capacity_bytes", None)
        if cap:
            return int(cap)
    except Exception:
        pass
    return 64 * 1024 * 1024


def _pick_tile_n(n_pad, cost_fn, budget, cap=None):
    """Largest tn = 128*d with d | (n_pad/128) whose working set fits `budget`."""
    units = n_pad // 128
    best = 128
    for d in range(1, units + 1):
        if units % d:
            continue
        tn = 128 * d
        if cap is not None and tn > cap:
            continue
        if cost_fn(tn) <= budget:
            best = max(best, tn)
    return best


# ---------------------------------------------------------------------------
# Pass 1 (no C split): attention = softmax(rowmax(X X^T) - X X^T)
# ---------------------------------------------------------------------------
def _attention_kernel(x_ref, attn_ref, acc_ref):
    """grid = (B, KN).  x_ref: (1, C, TN); attn_ref: (1, C, C) bf16;
    acc_ref: (C, C) f32 VMEM scratch (persists across the KN axis)."""
    k = pl.program_id(1)

    @pl.when(k == 0)
    def _():
        acc_ref[...] = jnp.zeros_like(acc_ref)

    xb = x_ref[0].astype(jnp.bfloat16)                    # (C, TN), bf16 for MXU
    # energy += X_tile @ X_tile^T  (contract the spatial axis of both operands)
    acc_ref[...] += jax.lax.dot_general(
        xb, xb,
        dimension_numbers=(((1,), (1,)), ((), ())),
        preferred_element_type=jnp.float32,
    )

    @pl.when(k == pl.num_programs(1) - 1)
    def _():
        energy = acc_ref[...]
        # softmax(rowmax(e) - e) == softmax(-e); stable form exp(rowmin(e) - e).
        e = jnp.exp(jnp.min(energy, axis=-1, keepdims=True) - energy)
        inv = pl.reciprocal(jnp.sum(e, axis=-1, keepdims=True), approx=True)
        attn_ref[0] = (e * inv).astype(attn_ref.dtype)


# ---------------------------------------------------------------------------
# Pass 1 (C split into row blocks): same math, rows of energy split over a
# second "parallel" grid axis so both v7x TensorCores work when B == 1.
# ---------------------------------------------------------------------------
def _attention_kernel_split(x_lhs_ref, x_rhs_ref, attn_ref, acc_ref):
    """grid = (B, CB, KN).  x_lhs_ref: (1, TC, TN); x_rhs_ref: (1, C, TN);
    attn_ref: (1, TC, C) bf16; acc_ref: (TC, C) f32 scratch."""
    k = pl.program_id(2)

    @pl.when(k == 0)
    def _():
        acc_ref[...] = jnp.zeros_like(acc_ref)

    lhs = x_lhs_ref[0].astype(jnp.bfloat16)               # (TC, TN)
    rhs = x_rhs_ref[0].astype(jnp.bfloat16)               # (C, TN)
    acc_ref[...] += jax.lax.dot_general(
        lhs, rhs,
        dimension_numbers=(((1,), (1,)), ((), ())),
        preferred_element_type=jnp.float32,
    )

    @pl.when(k == pl.num_programs(2) - 1)
    def _():
        energy = acc_ref[...]                              # full rows -> exact softmax
        e = jnp.exp(jnp.min(energy, axis=-1, keepdims=True) - energy)
        inv = pl.reciprocal(jnp.sum(e, axis=-1, keepdims=True), approx=True)
        attn_ref[0] = (e * inv).astype(attn_ref.dtype)


# ---------------------------------------------------------------------------
# Pass 2: y[:, :, tile] = beta * (attn @ X[:, :, tile]) + x[:, :, tile]
# ---------------------------------------------------------------------------
def _apply_kernel(beta_ref, attn_ref, x_ref, o_ref):
    """grid = (B, KN).  beta_ref: (1,) SMEM; attn_ref: (1, C, C) bf16;
    x_ref / o_ref: (1, C, TN)."""
    x = x_ref[0]
    out = jnp.dot(attn_ref[0], x.astype(jnp.bfloat16),
                  preferred_element_type=jnp.float32)     # (C, TN) f32
    o_ref[0] = (beta_ref[0] * out + x.astype(jnp.float32)).astype(o_ref.dtype)


@functools.partial(jax.jit, static_argnames=("tile_n", "c_split"))
def channel_attention_module(x, beta, *, tile_n=None, c_split=None):
    """Forward pass of _ChannelAttentionModule.

    x:       (B, C, H, W) float32 (NCHW, same as PyTorch)
    beta:    (1,)         float32 learnable scalar (zeros at init)
    tile_n:  optional cap on the spatial tile size (auto / VMEM-driven if None)
    c_split: optional number of C row blocks for pass 1 (auto if None)
    """
    B, C, H, W = x.shape
    N = H * W

    # --- spatial padding: minimal, only up to the next multiple of 128.
    # Zero columns contribute 0 to energy and 0 output columns (sliced off).
    n_pad = _round_up(N, 128)
    x_flat = x.reshape(B, C, N)
    if n_pad != N:
        x_flat = jnp.pad(x_flat, ((0, 0), (0, 0), (0, n_pad - N)))

    # --- pass-1 C row split (megacore usable for B == 1 inference on v7x).
    if c_split is None:
        cb = 2 if (B == 1 and C >= 256 and (C // 2) % 8 == 0) else 1
    else:
        cb = int(c_split)
    if cb < 1 or C % cb != 0 or (cb > 1 and (C // cb) % 8 != 0):
        cb = 1
    tc = C // cb

    # --- VMEM-budget-driven tiles, derived per chip generation.
    cap = _vmem_capacity_bytes()
    vmem_limit = min(int(cap * 0.85), cap - 8 * 1024 * 1024)   # headroom
    tile_budget = int(vmem_limit * 0.9)
    itemsize = x_flat.dtype.itemsize

    def p1_cost(tn):
        acc = tc * C * 4                     # f32 accumulator scratch
        attn_out = 2 * tc * C * 2            # double-buffered bf16 attn block
        if cb > 1:
            xin = 2 * tc * tn * itemsize + 2 * C * tn * itemsize
        else:
            xin = 2 * C * tn * itemsize
        return acc + attn_out + xin

    def p2_cost(tn):
        # double-buffered bf16 attn + double-buffered X in + double-buffered out
        return 2 * C * C * 2 + 4 * C * tn * itemsize

    tn1 = _pick_tile_n(n_pad, p1_cost, tile_budget, cap=tile_n)
    tn2 = _pick_tile_n(n_pad, p2_cost, tile_budget, cap=tile_n)
    kn1 = n_pad // tn1
    kn2 = n_pad // tn2

    # --- pass 1: per-batch attention matrix, stored bf16 for the 2nd matmul.
    if cb == 1:
        attn = pl.pallas_call(
            _attention_kernel,
            out_shape=jax.ShapeDtypeStruct((B, C, C), jnp.bfloat16),
            grid=(B, kn1),
            in_specs=[pl.BlockSpec((1, C, tn1), lambda b, k: (b, 0, k))],
            out_specs=pl.BlockSpec((1, C, C), lambda b, k: (b, 0, 0)),
            scratch_shapes=[pltpu.VMEM((C, C), jnp.float32)],
            compiler_params=pltpu.CompilerParams(
                dimension_semantics=("parallel", "arbitrary"),
                vmem_limit_bytes=vmem_limit,
            ),
        )(x_flat)
    else:
        attn = pl.pallas_call(
            _attention_kernel_split,
            out_shape=jax.ShapeDtypeStruct((B, C, C), jnp.bfloat16),
            grid=(B, cb, kn1),
            in_specs=[
                pl.BlockSpec((1, tc, tn1), lambda b, ci, k: (b, ci, k)),  # LHS rows
                pl.BlockSpec((1, C, tn1), lambda b, ci, k: (b, 0, k)),    # RHS full
            ],
            out_specs=pl.BlockSpec((1, tc, C), lambda b, ci, k: (b, ci, 0)),
            scratch_shapes=[pltpu.VMEM((tc, C), jnp.float32)],
            compiler_params=pltpu.CompilerParams(
                dimension_semantics=("parallel", "parallel", "arbitrary"),
                vmem_limit_bytes=vmem_limit,
            ),
        )(x_flat, x_flat)

    # --- pass 2: apply attention per N tile + residual (fully parallel).
    # TODO(synk): for the mem-bound small/mid-C regime on v5e/v6e, a fused
    # single-pallas_call variant keeping the whole (C, n_pad) slab in VMEM
    # would cut HBM traffic ~30-40%; not implemented here.
    out = pl.pallas_call(
        _apply_kernel,
        out_shape=jax.ShapeDtypeStruct((B, C, n_pad), x.dtype),
        grid=(B, kn2),
        in_specs=[
            pl.BlockSpec(memory_space=pltpu.MemorySpace.SMEM),    # beta scalar
            pl.BlockSpec((1, C, C), lambda b, k: (b, 0, 0)),      # attention
            pl.BlockSpec((1, C, tn2), lambda b, k: (b, 0, k)),    # X tile
        ],
        out_specs=pl.BlockSpec((1, C, tn2), lambda b, k: (b, 0, k)),
        compiler_params=pltpu.CompilerParams(
            dimension_semantics=("parallel", "parallel"),
            vmem_limit_bytes=vmem_limit,
        ),
    )(beta, attn, x_flat)

    if n_pad != N:
        out = out[:, :, :N]
    return out.reshape(B, C, H, W)


def channel_attention_ref(x, beta, matmul_dtype=jnp.float32):
    """Pure-JAX reference mirroring the PyTorch forward.

    matmul_dtype=jnp.bfloat16 reproduces the kernel's MXU-native precision
    (bf16 matmul inputs, f32 accumulation)."""
    B, C, H, W = x.shape
    xf = x.reshape(B, C, H * W).astype(matmul_dtype)
    energy = jnp.einsum("bcn,bdn->bcd", xf, xf,
                        preferred_element_type=jnp.float32,
                        precision=jax.lax.Precision.HIGHEST)
    attn = jnp.max(energy, axis=-1, keepdims=True) - energy
    attn = jax.nn.softmax(attn, axis=-1)
    out = jnp.einsum("bcd,bdn->bcn", attn.astype(matmul_dtype), xf,
                     preferred_element_type=jnp.float32,
                     precision=jax.lax.Precision.HIGHEST)
    out = out.reshape(B, C, H, W)
    return beta[0] * out + x


if __name__ == "__main__":
    key = jax.random.PRNGKey(0)

    # Small shapes consistent with the module's forward (NCHW).
    B, C, H, W = 2, 4, 16, 16
    x = jax.random.normal(key, (B, C, H, W), dtype=jnp.float32)

    # Parameter init exactly as in __init__: beta = nn.Parameter(torch.zeros(1))
    beta0 = jnp.zeros((1,), dtype=jnp.float32)
    y0 = jax.block_until_ready(channel_attention_module(x, beta0))
    # beta == 0  =>  y == x exactly (residual path only).
    assert jnp.allclose(y0, x, atol=1e-6, rtol=1e-6)

    # Non-zero beta exercises the attention path.  Tight check vs a reference
    # at the same (bf16 in / f32 acc) matmul precision; loose sanity check vs
    # full f32 (the sharp softmax amplifies bf16 logit rounding on ties).
    beta1 = jnp.array([0.5], dtype=jnp.float32)
    y1 = jax.block_until_ready(channel_attention_module(x, beta1))

    y1_bf16_ref = channel_attention_ref(x, beta1, matmul_dtype=jnp.bfloat16)
    assert jnp.allclose(y1, y1_bf16_ref, atol=3e-2, rtol=3e-2), float(
        jnp.max(jnp.abs(y1 - y1_bf16_ref)))

    y1_f32_ref = channel_attention_ref(x, beta1, matmul_dtype=jnp.float32)
    assert jnp.allclose(y1, y1_f32_ref, atol=2.5e-1, rtol=2.5e-1), float(
        jnp.max(jnp.abs(y1 - y1_f32_ref)))

    # Spatial size that is NOT a multiple of 128 (minimal lane-padding path)
    # and a different channel count.
    x2 = jax.random.normal(jax.random.PRNGKey(1), (2, 8, 10, 10), jnp.float32)
    y2 = jax.block_until_ready(channel_attention_module(x2, beta1))
    y2_ref = channel_attention_ref(x2, beta1, matmul_dtype=jnp.bfloat16)
    assert jnp.allclose(y2, y2_ref, atol=3e-2, rtol=3e-2), float(
        jnp.max(jnp.abs(y2 - y2_ref)))

    # Exercise the pass-1 C-row-split path (megacore-friendly B == 1 case).
    x3 = jax.random.normal(jax.random.PRNGKey(2), (1, 16, 16, 16), jnp.float32)
    y3 = jax.block_until_ready(channel_attention_module(x3, beta1, c_split=2))
    y3_ref = channel_attention_ref(x3, beta1, matmul_dtype=jnp.bfloat16)
    assert jnp.allclose(y3, y3_ref, atol=3e-2, rtol=3e-2), float(
        jnp.max(jnp.abs(y3 - y3_ref)))

    print("KERNEL_OK")
</pallas_src>

<mosaic_0001>
module attributes {stable_mosaic.version = 11 : i64} {
  func.func @_attention_kernel(%arg0: i32, %arg1: i32, %arg2: memref<1x4x256xf32, #tpu.memory_space<vmem>>, %arg3: memref<1x4x4xbf16, #tpu.memory_space<vmem>>, %arg4: memref<4x4xf32, #tpu.memory_space<vmem>>) attributes {dimension_semantics = [#tpu.dimension_semantics<parallel>, #tpu.dimension_semantics<arbitrary>], iteration_bounds = array<i64: 2, 1>, scalar_prefetch = 0 : i64, scratch_operands = 1 : i64, tpu.core_type = #tpu.core_type<tc>, window_params = [{transform_indices = @transform_0, window_bounds = array<i64: 1, 4, 256>}, {transform_indices = @transform_1, window_bounds = array<i64: 1, 4, 4>}]} {
    %c0_i32 = arith.constant 0 : i32
    %0 = arith.cmpi eq, %arg1, %c0_i32 : i32
    %1 = arith.extui %0 : i1 to i32
    %c0_i32_0 = arith.constant 0 : i32
    %2 = arith.cmpi ne, %1, %c0_i32_0 : i32
    scf.if %2 {
      %cst_9 = arith.constant 0.000000e+00 : f32
      %13 = vector.broadcast %cst_9 : f32 to vector<4x4xf32>
      %c0_10 = arith.constant 0 : index
      %c0_11 = arith.constant 0 : index
      %14 = vector.load %arg4[%c0_10, %c0_11] : memref<4x4xf32, #tpu.memory_space<vmem>>, vector<4x4xf32>
      tpu.vector_store %arg4[%c0_10, %c0_11], %13 {strides = array<i32>} : memref<4x4xf32, #tpu.memory_space<vmem>>, vector<4x4xf32>,
    } else {
    }
    %c0 = arith.constant 0 : index
    %c0_1 = arith.constant 0 : index
    %c0_2 = arith.constant 0 : index
    %3 = vector.load %arg2[%c0, %c0_1, %c0_2] : memref<1x4x256xf32, #tpu.memory_space<vmem>>, vector<1x4x256xf32>
    %4 = vector.shape_cast %3 : vector<1x4x256xf32> to vector<4x256xf32>
    %5 = arith.truncf %4 : vector<4x256xf32> to vector<4x256xbf16>
    %c0_3 = arith.constant 0 : index
    %c0_4 = arith.constant 0 : index
    %6 = vector.load %arg4[%c0_3, %c0_4] : memref<4x4xf32, #tpu.memory_space<vmem>>, vector<4x4xf32>
    %cst = arith.constant dense<0.000000e+00> : vector<4x4xf32>
    %7 = tpu.matmul %5, %5, %cst {dimension_numbers = #tpu.dot_dimension_numbers<[1], [1], [0], [0], [0, 0, 1, 0], [], []>} : vector<4x256xbf16>, vector<4x256xbf16>, vector<4x4xf32> -> vector<4x4xf32>
    %8 = arith.addf %6, %7 : vector<4x4xf32>
    %c0_5 = arith.constant 0 : index
    %c0_6 = arith.constant 0 : index
    %9 = vector.load %arg4[%c0_5, %c0_6] : memref<4x4xf32, #tpu.memory_space<vmem>>, vector<4x4xf32>
    tpu.vector_store %arg4[%c0_5, %c0_6], %8 {strides = array<i32>} : memref<4x4xf32, #tpu.memory_space<vmem>>, vector<4x4xf32>,
    %c0_i32_7 = arith.constant 0 : i32
    %10 = arith.cmpi eq, %arg1, %c0_i32_7 : i32
    %11 = arith.extui %10 : i1 to i32
    %c0_i32_8 = arith.constant 0 : i32
    %12 = arith.cmpi ne, %11, %c0_i32_8 : i32
    scf.if %12 {
      %c0_9 = arith.constant 0 : index
      %c0_10 = arith.constant 0 : index
      %13 = vector.load %arg4[%c0_9, %c0_10] : memref<4x4xf32, #tpu.memory_space<vmem>>, vector<4x4xf32>
      %cst_11 = arith.constant dense<0x7F800000> : vector<4xf32>
      %14 = vector.multi_reduction <minimumf>, %13, %cst_11 [1] : vector<4x4xf32> to vector<4xf32>
      %15 = vector.shape_cast %14 : vector<4xf32> to vector<4x1xf32>
      %16 = vector.broadcast %15 : vector<4x1xf32> to vector<4x4xf32>
      %17 = arith.subf %16, %13 : vector<4x4xf32>
      %18 = math.exp %17 : vector<4x4xf32>
      %cst_12 = arith.constant dense<0.000000e+00> : vector<4xf32>
      %19 = vector.multi_reduction <add>, %18, %cst_12 [1] : vector<4x4xf32> to vector<4xf32>
      %20 = vector.shape_cast %19 : vector<4xf32> to vector<4x1xf32>
      %21 = tpu.reciprocal %20 {approx = true} : vector<4x1xf32> -> vector<4x1xf32>
      %22 = vector.broadcast %21 : vector<4x1xf32> to vector<4x4xf32>
      %23 = arith.mulf %18, %22 : vector<4x4xf32>
      %24 = arith.truncf %23 : vector<4x4xf32> to vector<4x4xbf16>
      %c0_13 = arith.constant 0 : index
      %c0_14 = arith.constant 0 : index
      %c0_15 = arith.constant 0 : index
      %25 = vector.load %arg3[%c0_13, %c0_14, %c0_15] : memref<1x4x4xbf16, #tpu.memory_space<vmem>>, vector<1x4x4xbf16>
      %26 = vector.shape_cast %25 : vector<1x4x4xbf16> to vector<4x4xbf16>
      %27 = vector.shape_cast %24 : vector<4x4xbf16> to vector<1x4x4xbf16>
      tpu.vector_store %arg3[%c0_13, %c0_14, %c0_15], %27 {strides = array<i32>} : memref<1x4x4xbf16, #tpu.memory_space<vmem>>, vector<1x4x4xbf16>,
    } else {
    }
    return
  }
  func.func @transform_0(%arg0: i32, %arg1: i32) -> (i32, i32, i32) {
    %c0_i32 = arith.constant 0 : i32
    %c0_i32_0 = arith.constant 0 : i32
    return %arg0, %c0_i32, %arg1 : i32, i32, i32
  }
  func.func @transform_1(%arg0: i32, %arg1: i32) -> (i32, i32, i32) {
    %c0_i32 = arith.constant 0 : i32
    %c0_i32_0 = arith.constant 0 : i32
    %c0_i32_1 = arith.constant 0 : i32
    return %arg0, %c0_i32, %c0_i32_0 : i32, i32, i32
  }
}

module attributes {stable_mosaic.version = 11 : i64} {
  func.func @_apply_kernel(%arg0: i32, %arg1: i32, %arg2: memref<1xf32, #tpu.memory_space<smem>>, %arg3: memref<1x4x4xbf16, #tpu.memory_space<vmem>>, %arg4: memref<1x4x256xf32, #tpu.memory_space<vmem>>, %arg5: memref<1x4x256xf32, #tpu.memory_space<vmem>>) attributes {dimension_semantics = [#tpu.dimension_semantics<parallel>, #tpu.dimension_semantics<parallel>], iteration_bounds = array<i64: 2, 1>, scalar_prefetch = 0 : i64, scratch_operands = 0 : i64, tpu.core_type = #tpu.core_type<tc>, window_params = [{transform_indices = @transform_0, window_bounds = array<i64: 1>}, {transform_indices = @transform_1, window_bounds = array<i64: 1, 4, 4>}, {transform_indices = @transform_2, window_bounds = array<i64: 1, 4, 256>}, {transform_indices = @transform_3, window_bounds = array<i64: 1, 4, 256>}]} {
    %c0 = arith.constant 0 : index
    %c0_0 = arith.constant 0 : index
    %c0_1 = arith.constant 0 : index
    %0 = vector.load %arg4[%c0, %c0_0, %c0_1] : memref<1x4x256xf32, #tpu.memory_space<vmem>>, vector<1x4x256xf32>
    %1 = vector.shape_cast %0 : vector<1x4x256xf32> to vector<4x256xf32>
    %c0_2 = arith.constant 0 : index
    %c0_3 = arith.constant 0 : index
    %c0_4 = arith.constant 0 : index
    %2 = vector.load %arg3[%c0_2, %c0_3, %c0_4] : memref<1x4x4xbf16, #tpu.memory_space<vmem>>, vector<1x4x4xbf16>
    %3 = vector.shape_cast %2 : vector<1x4x4xbf16> to vector<4x4xbf16>
    %4 = arith.truncf %1 : vector<4x256xf32> to vector<4x256xbf16>
    %cst = arith.constant dense<0.000000e+00> : vector<4x256xf32>
    %5 = tpu.matmul %3, %4, %cst {dimension_numbers = #tpu.dot_dimension_numbers<[1], [0], [0], [1], [0, 0, 1, 1], [], []>} : vector<4x4xbf16>, vector<4x256xbf16>, vector<4x256xf32> -> vector<4x256xf32>
    %c0_5 = arith.constant 0 : index
    %6 = memref.load %arg2[%c0_5] : memref<1xf32, #tpu.memory_space<smem>>
    %7 = vector.broadcast %6 : f32 to vector<4x256xf32>
    %8 = arith.mulf %7, %5 : vector<4x256xf32>
    %9 = arith.addf %8, %1 : vector<4x256xf32>
    %c0_6 = arith.constant 0 : index
    %c0_7 = arith.constant 0 : index
    %c0_8 = arith.constant 0 : index
    %10 = vector.load %arg5[%c0_6, %c0_7, %c0_8] : memref<1x4x256xf32, #tpu.memory_space<vmem>>, vector<1x4x256xf32>
    %11 = vector.shape_cast %10 : vector<1x4x256xf32> to vector<4x256xf32>
    %12 = vector.shape_cast %9 : vector<4x256xf32> to vector<1x4x256xf32>
    tpu.vector_store %arg5[%c0_6, %c0_7, %c0_8], %12 {strides = array<i32>} : memref<1x4x256xf32, #tpu.memory_space<vmem>>, vector<1x4x256xf32>,
    return
  }
  func.func @transform_0(%arg0: i32, %arg1: i32) -> i32 {
    %c0_i32 = arith.constant 0 : i32
    %c0_i32_0 = arith.constant 0 : i32
    return %c0_i32 : i32
  }
  func.func @transform_1(%arg0: i32, %arg1: i32) -> (i32, i32, i32) {
    %c0_i32 = arith.constant 0 : i32
    %c0_i32_0 = arith.constant 0 : i32
    %c0_i32_1 = arith.constant 0 : i32
    return %arg0, %c0_i32, %c0_i32_0 : i32, i32, i32
  }
  func.func @transform_2(%arg0: i32, %arg1: i32) -> (i32, i32, i32) {
    %c0_i32 = arith.constant 0 : i32
    %c0_i32_0 = arith.constant 0 : i32
    return %arg0, %c0_i32, %arg1 : i32, i32, i32
  }
  func.func @transform_3(%arg0: i32, %arg1: i32) -> (i32, i32, i32) {
    %c0_i32 = arith.constant 0 : i32
    %c0_i32_0 = arith.constant 0 : i32
    return %arg0, %c0_i32, %arg1 : i32, i32, i32
  }
}

</mosaic_0001>

<llo_original>
// kernel: channel_attention_module.2
$region0: #{channel_attention_module.2}
  #allocation0 [shape = 'u32[]', space=smem, size = 0x4, offset = 0x4, fixed_abs, tag = 'smem constant byte address 0x4 - core index']
  #allocation1 [shape = 'u32[72,128]{1,0:T(1,128)}', space=vmem, size = 0x9000, scoped, tag = 'internal scratch']
  #allocation2 [shape = 'f32[4,4]{1,0:T(4,128)}', space=vmem, size = 0x800, scoped, tag = 'scratch operand']
  %s0 = inlined_call_operand.vmem [shape: f32[2,4,256], index: 0, kind: input, shape index: {}]
  %s1 = inlined_call_operand.vmem [shape: bf16[2,4,4], index: 1, kind: output, shape index: {}]
  %s2 = sld [smem:[#allocation0]]
  $region45: #{channel_attention_module.2} parent=0
    _
  %s4 = ssub.s32 1, %s2
  %s5 = scalar_select 0, %s4, %s2
  loop: start=0, step=1, limit=4
  $region2: #{channel_attention_module.2} parent=0 // loop_pre_header
    _
  $region3: #{channel_attention_module.2} parent=0 // loop_header
    %s7 = sphi 0, %s11
    %p8 = scmp.ge.s32.totalorder %s7, 4
    %s14 = sphi 0, %s26
    %s15 = sphi 0, %s22
    %s16 = sphi 0, %s14
    %s17 = sphi 0, %s15
    %s18 = sphi 0, %s16
    %s19 = sphi 0, %s17
    %s31 = sphi 0, %s33
    %s34 = sphi 0, %s31
    %s35 = sphi 0, %s34
    %s51 = sphi 0, %s35
    %s57 = sphi 0, %s59
    %s60 = sphi 0, %s57
    %s61 = sphi 0, %s60
    %s77 = sphi 0, %s61
  $region4: #{channel_attention_module.2} parent=0 // loop_header_branch
    %10 = sbr.rel (%p8) target = $region8
  $region5: #{channel_attention_module.2} parent=0 // loop_body
    %s12 = ssub.s32 %s7, 1
    %s13 = ssub.s32 %s7, 2
    %s20 = sadd.s32 1, %s15
    %p21 = scmp.ge.s32.totalorder %s20, 1
    %s22 = scalar_select %p21, 0, %s20
    %s23 = sadd.s32 1, %s14
    %s24 = scalar_select %p21, %s23, %s14
    %p25 = scmp.ge.s32.totalorder %s24, 2
    %s26 = scalar_select %p25, 0, %s24
    %s27 = ssub.s32 %s14, %s26
    %s28 = ssub.s32 %s15, %s22
    %s29 = sor.u32 %s27, %s28
    %p30 = scmp.eq.s32.totalorder %s29, 0
    %s32 = sadd.s32 %s31, 1
    %s33 = scalar_select %p30, %s31, %s32
    %p36 = pneg %p30
    %p37 = scmp.eq.s32.totalorder %s7, 1
    %p38 = por %p36, %p37
    %p39 = scmp.ne.s32.totalorder %s31, %s34
    %p40 = scmp.eq.s32.totalorder %s7, 0
    %p41 = por %p39, %p40
    %p42 = scmp.ne.s32.totalorder %s31, %s34
    %p43 = scmp.eq.s32.totalorder %s12, 1
    %p44 = por %p42, %p43
    %p45 = scmp.ne.s32.totalorder %s34, %s35
    %p46 = scmp.eq.s32.totalorder %s12, 0
    %p47 = por %p45, %p46
    %p48 = scmp.ne.s32.totalorder %s34, %s35
    %p49 = scmp.eq.s32.totalorder %s13, 1
    %p50 = por %p48, %p49
    %p52 = scmp.ne.s32.totalorder %s35, %s51
    %p53 = scmp.eq.s32.totalorder %s13, 0
    %p54 = por %p52, %p53
    %s55 = ssub.s32 %s14, %s26
    %p56 = scmp.eq.s32.totalorder %s55, 0
    %s58 = sadd.s32 %s57, 1
    %s59 = scalar_select %p56, %s57, %s58
    %p62 = pneg %p56
    %p63 = scmp.eq.s32.totalorder %s7, 1
    %p64 = por %p62, %p63
    %p65 = scmp.ne.s32.totalorder %s57, %s60
    %p66 = scmp.eq.s32.totalorder %s7, 0
    %p67 = por %p65, %p66
    %p68 = scmp.ne.s32.totalorder %s57, %s60
    %p69 = scmp.eq.s32.totalorder %s12, 1
    %p70 = por %p68, %p69
    %p71 = scmp.ne.s32.totalorder %s60, %s61
    %p72 = scmp.eq.s32.totalorder %s12, 0
    %p73 = por %p71, %p72
    %p74 = scmp.ne.s32.totalorder %s60, %s61
    %p75 = scmp.eq.s32.totalorder %s13, 1
    %p76 = por %p74, %p75
    %p78 = scmp.ne.s32.totalorder %s61, %s77
    %p79 = scmp.eq.s32.totalorder %s13, 0
    %p80 = por %p78, %p79
    %p81 = scmp.le.s32.totalorder 1, %s7
    %p82 = scmp.lt.s32.totalorder %s7, 3
    %p83 = pnand %p81, %p82
    %p84 = pneg %p83
    // Predicated region
    $region9: #{channel_attention_module.2} parent=5 // pred_check
      _
    $region10: #{channel_attention_module.2} parent=5 // pred_check_branch
      %86 = sbr.rel (%p83) target = $region12
    $region11: #{channel_attention_module.2} parent=5 // pred_region
      %s87 = ssub.s32 %s7, 1
    $region12: #{channel_attention_module.2} parent=5 // pred_fallthru
      _
    %p88 = scmp.lt.s32.totalorder %s7, 2
    // Predicated region
    $region13: #{channel_attention_module.2} parent=5 // pred_check
      %p89 = pneg %p88
    $region14: #{channel_attention_module.2} parent=5 // pred_check_branch
      %91 = sbr.rel (%p89) target = $region16
    $region15: #{channel_attention_module.2} parent=5 // pred_region
      // Predicated region
      $region17: #{channel_attention_module.2} parent=15 // pred_check
        %p92 = pneg %p41
      $region18: #{channel_attention_module.2} parent=15 // pred_check_branch
        %94 = sbr.rel (%p92) target = $region20
      $region19: #{channel_attention_module.2} parent=15 // pred_region
        %s95 = smul.u32 2, %s15
        %p96 = scmp.lt.s32.totalorder %s14, 1
        %s97 = scalar_select %p96, %s14, 1
        %p98 = scmp.lt.s32.totalorder %s95, 1
        %s99 = scalar_select %p98, %s95, 1
        %s100 = smul.addr %s97, 2
        %s101 = sadd.s32 %s99, %s100
        %s102 = smul.addr %s101, 4
        %s103 = scalar_lea.vmem %s0, %s102
        %s104 = smul.u32 2, %s15
      $region20: #{channel_attention_module.2} parent=15 // pred_fallthru
        _
    $region16: #{channel_attention_module.2} parent=5 // pred_fallthru
      _
    %p105 = scmp.le.s32.totalorder 1, %s7
    %p106 = scmp.lt.s32.totalorder %s7, 3
    %p107 = pnand %p105, %p106
    %p108 = pneg %p107
    // Predicated region
    $region21: #{channel_attention_module.2} parent=5 // pred_check
      _
    $region22: #{channel_attention_module.2} parent=5 // pred_check_branch
      %110 = sbr.rel (%p107) target = $region24
    $region23: #{channel_attention_module.2} parent=5 // pred_region
      %s111 = ssub.s32 %s7, 1
      %s112 = smul.u32 2, %s17
      %p113 = scmp.lt.s32.totalorder %s16, 1
      %s114 = scalar_select %p113, %s16, 1
      %p115 = scmp.lt.s32.totalorder %s112, 1
      %s116 = scalar_select %p115, %s112, 1
      %s117 = smul.addr %s114, 2
      %s118 = sadd.s32 %s116, %s117
      %s119 = smul.addr %s118, 4
      %s120 = scalar_lea.vmem %s0, %s119
      %p121 = pneg %p47
      %p122 = pneg %p44
      %p123 = pneg %p73
      %p124 = pneg %p70
      %p125 = scmp.lt.s32.totalorder %s16, 1
      %s126 = scalar_select %p125, %s16, 1
      %s127 = smul.addr %s126, 2
      %s128 = scalar_lea.vmem %s1, %s127
      %s129 = smul.u32 2, %s17
      %p130 = scmp.lt.s32.totalorder %s16, 1
      %s131 = scalar_select %p130, %s16, 1
      %p132 = scmp.lt.s32.totalorder %s129, 1
      %s133 = scalar_select %p132, %s129, 1
      %s134 = smul.addr %s131, 2
      %s135 = sadd.s32 %s133, %s134
      %s136 = smul.addr %s135, 4
      %s137 = scalar_lea.vmem %s0, %s136
      %s138 = smul.u32 2, %s17
      %p139 = scmp.lt.s32.totalorder %s16, 1
      %s140 = scalar_select %p139, %s16, 1
      %s141 = smul.addr %s140, 2
      %s142 = scalar_lea.vmem %s1, %s141
      %p144 = scmp.eq.s32.totalorder %s17, 0
      // Predicated region
      $region25: #{channel_attention_module.2} parent=23 // pred_check
        %p145 = pneg %p144
      $region26: #{channel_attention_module.2} parent=23 // pred_check_branch
        %147 = sbr.rel (%p145) target = $region28
      $region27: #{channel_attention_module.2} parent=23 // pred_region
        %vm148 = vcmask 27648
        %149 = vst.msk [vmem:[#allocation2] sm:$0xf] %vm148, 0.0
      $region28: #{channel_attention_module.2} parent=23 // pred_fallthru
        _
      %v150 = vld [vmem:[%s137] sm:$0xff]
      %152 = vst [vmem:[#allocation1] ss:$2 sm:$0xff] %v150
      %v153 = vld.sshfl [vmem:[#allocation1] sm:$0xff pattern:$0x75316420]
      %v154 = vld.sshfl [vmem:[#allocation1 + $0x8] sm:$0xff pattern:$0x75316420]
      %v157 = vpack.c.bf16 %v153, %v153
      %v158 = vpack.c.bf16 %v154, %v154
      %v159 = vld [vmem:[#allocation2] sm:$0xf]
      %160 = vmatpush.bf16.xpose.msra.mxu0 0
      %161 = vmatpush.bf16.xpose.msra.mxu0 0
      %162 = vmatpush.bf16.xpose.msra.mxu0 0
      %163 = vmatpush.bf16.xpose.msra.mxu0 0
      %164 = vmatpush.bf16.xpose.msra.mxu0 0
      %165 = vmatpush.bf16.xpose.msra.mxu0 0
      %166 = vmatpush.bf16.xpose.msra.mxu0 0
      %167 = vmatpush.bf16.xpose.msra.mxu0 %v157
      %168 = vmatmul.bf16.gmra.mxu0 %v157
      %v169 = vpop.f32.mrf.mxu0
      %v170 = vadd.f32 0.0, %v169
      %v171 = vpop.f32.mrf.mxu0
      %172 = vdwg.mxu0
      %173 = vmatpush.bf16.xpose.msra.mxu0 0
      %174 = vmatpush.bf16.xpose.msra.mxu0 0
      %175 = vmatpush.bf16.xpose.msra.mxu0 0
      %176 = vmatpush.bf16.xpose.msra.mxu0 0
      %177 = vmatpush.bf16.xpose.msra.mxu0 0
      %178 = vmatpush.bf16.xpose.msra.mxu0 0
      %179 = vmatpush.bf16.xpose.msra.mxu0 0
      %180 = vmatpush.bf16.xpose.msra.mxu0 %v158
      %181 = vmatmul.bf16.gmra.mxu0 %v158
      %v182 = vpop.f32.mrf.mxu0
      %v183 = vadd.f32 %v170, %v182
      %v184 = vpop.f32.mrf.mxu0
      %185 = vdwg.mxu0
      %v186 = vadd.f32 %v159, %v183
      %vm187 = vcmask 27648
      %188 = vst.msk [vmem:[#allocation2] sm:$0xf] %vm187, %v186
      // Predicated region
      $region29: #{channel_attention_module.2} parent=23 // pred_check
        %p189 = pneg %p144
      $region30: #{channel_attention_module.2} parent=23 // pred_check_branch
        %191 = sbr.rel (%p189) target = $region32
      $region31: #{channel_attention_module.2} parent=23 // pred_region
        %v192 = vld [vmem:[#allocation2] sm:$0xf]
        %v193 = vsel %vm187, %v192, inf
        %194 = vmin.xlane.f32.xlu0 %v193
        %v195 = vpop.xlane.xlu0 %194
        %v196 = vsub.f32 %v195, %v192
        %v197 = vmul.f32 %v196, 1.442695
        %v198 = vpow.pop %v197
        %v199 = vsel %vm187, %v198, 0.0
        %200 = vadd.xlane.f32.xlu0 %v199
        %v201 = vpop.xlane.xlu0 %200
        %v202 = vrcp.pop %v201
        %v203 = vmul.f32 %v198, %v202
        %v204 = vpack.c.bf16 %v203, %v203
        %vm205 = vcmask 25600
        %206 = vst.msk [vmem:[%s142] sm:$0x3] %vm205, %v204
      $region32: #{channel_attention_module.2} parent=23 // pred_fallthru
        _
      %p207 = scmp.lt.s32.totalorder %s16, 1
      %s208 = scalar_select %p207, %s16, 1
      %s209 = smul.addr %s208, 2
      %s210 = scalar_lea.vmem %s1, %s209
      // Predicated region
      $region33: #{channel_attention_module.2} parent=23 // pred_check
        %p211 = pneg %p70
      $region34: #{channel_attention_module.2} parent=23 // pred_check_branch
        %213 = sbr.rel (%p211) target = $region36
      $region35: #{channel_attention_module.2} parent=23 // pred_region
        _
      $region36: #{channel_attention_module.2} parent=23 // pred_fallthru
        _
    $region24: #{channel_attention_module.2} parent=5 // pred_fallthru
      _
    %p214 = scmp.le.s32.totalorder 2, %s7
    // Predicated region
    $region37: #{channel_attention_module.2} parent=5 // pred_check
      %p215 = pneg %p214
    $region38: #{channel_attention_module.2} parent=5 // pred_check_branch
      %217 = sbr.rel (%p215) target = $region40
    $region39: #{channel_attention_module.2} parent=5 // pred_region
      %s218 = ssub.s32 %s7, 2
      // Predicated region
      $region41: #{channel_attention_module.2} parent=39 // pred_check
        %p219 = pneg %p76
      $region42: #{channel_attention_module.2} parent=39 // pred_check_branch
        %221 = sbr.rel (%p219) target = $region44
      $region43: #{channel_attention_module.2} parent=39 // pred_region
        %p222 = scmp.lt.s32.totalorder %s18, 1
        %s223 = scalar_select %p222, %s18, 1
        %s224 = smul.addr %s223, 2
        %s225 = scalar_lea.vmem %s1, %s224
      $region44: #{channel_attention_module.2} parent=39 // pred_fallthru
        _
    $region40: #{channel_attention_module.2} parent=5 // pred_fallthru
      _
  $region6: #{channel_attention_module.2} parent=0 // loop_footer
    %s11 = sadd.s32 1, %s7
  $region7: #{channel_attention_module.2} parent=0 // loop_footer_branch
    %6 = sbr.rel target = $region3
  $region8: #{channel_attention_module.2} parent=0 // loop_exit
    _

// kernel: channel_attention_module.3
$region0: #{channel_attention_module.3}
  #allocation0 [shape = 'u32[]', space=smem, size = 0x4, offset = 0x4, fixed_abs, tag = 'smem constant byte address 0x4 - core index']
  #allocation1 [shape = 'u32[72,128]{1,0:T(1,128)}', space=vmem, size = 0x9000, scoped, tag = 'internal scratch']
  #allocation2 [shape = 'f32[1]{0:T(128)S(6)}', space=smem, size = 0x200, scoped, tag = 'scoped memory for channel_attention_module.3']
  %s0 = inlined_call_operand.<no memory space> [shape: f32[1], index: 0, kind: input, shape index: {}]
  %s1 = inlined_call_operand.vmem [shape: bf16[2,4,4], index: 1, kind: input, shape index: {}]
  %s2 = inlined_call_operand.vmem [shape: f32[2,4,256], index: 2, kind: input, shape index: {}]
  %s3 = inlined_call_operand.vmem [shape: f32[2,4,256], index: 3, kind: output, shape index: {}]
  %s4 = sld [smem:[#allocation0]]
  $region45: #{channel_attention_module.3} parent=0
    _
  %s6 = ssub.s32 1, %s4
  %s7 = scalar_select 0, %s6, %s4
  %8 = sst [smem:[#allocation2]] %s0
  loop: start=0, step=1, limit=4
  $region2: #{channel_attention_module.3} parent=0 // loop_pre_header
    _
  $region3: #{channel_attention_module.3} parent=0 // loop_header
    %s10 = sphi 0, %s14
    %p11 = scmp.ge.s32.totalorder %s10, 4
    %s17 = sphi 0, %s29
    %s18 = sphi 0, %s25
    %s19 = sphi 0, %s17
    %s20 = sphi 0, %s18
    %s21 = sphi 0, %s19
    %s22 = sphi 0, %s20
    %s30 = sphi 0, %s30
    %s32 = sphi 0, %s30
    %s33 = sphi 0, %s32
    %s47 = sphi 0, %s33
    %s53 = sphi 0, %s55
    %s56 = sphi 0, %s53
    %s57 = sphi 0, %s56
    %s73 = sphi 0, %s57
    %s81 = sphi 0, %s83
    %s84 = sphi 0, %s81
    %s85 = sphi 0, %s84
    %s101 = sphi 0, %s85
    %s109 = sphi 0, %s111
    %s112 = sphi 0, %s109
    %s113 = sphi 0, %s112
    %s129 = sphi 0, %s113
  $region4: #{channel_attention_module.3} parent=0 // loop_header_branch
    %13 = sbr.rel (%p11) target = $region8
  $region5: #{channel_attention_module.3} parent=0 // loop_body
    %s15 = ssub.s32 %s10, 1
    %s16 = ssub.s32 %s10, 2
    %s23 = sadd.s32 1, %s18
    %p24 = scmp.ge.s32.totalorder %s23, 1
    %s25 = scalar_select %p24, 0, %s23
    %s26 = sadd.s32 1, %s17
    %s27 = scalar_select %p24, %s26, %s17
    %p28 = scmp.ge.s32.totalorder %s27, 2
    %s29 = scalar_select %p28, 0, %s27
    %s31 = sadd.s32 %s30, 1
    %p34 = scmp.eq.s32.totalorder %s10, 1
    %p35 = scmp.ne.s32.totalorder %s30, %s32
    %p36 = scmp.eq.s32.totalorder %s10, 0
    %p37 = por %p35, %p36
    %p38 = scmp.ne.s32.totalorder %s30, %s32
    %p39 = scmp.eq.s32.totalorder %s15, 1
    %p40 = por %p38, %p39
    %p41 = scmp.ne.s32.totalorder %s32, %s33
    %p42 = scmp.eq.s32.totalorder %s15, 0
    %p43 = por %p41, %p42
    %p44 = scmp.ne.s32.totalorder %s32, %s33
    %p45 = scmp.eq.s32.totalorder %s16, 1
    %p46 = por %p44, %p45
    %p48 = scmp.ne.s32.totalorder %s33, %s47
    %p49 = scmp.eq.s32.totalorder %s16, 0
    %p50 = por %p48, %p49
    %s51 = ssub.s32 %s17, %s29
    %p52 = scmp.eq.s32.totalorder %s51, 0
    %s54 = sadd.s32 %s53, 1
    %s55 = scalar_select %p52, %s53, %s54
    %p58 = pneg %p52
    %p59 = scmp.eq.s32.totalorder %s10, 1
    %p60 = por %p58, %p59
    %p61 = scmp.ne.s32.totalorder %s53, %s56
    %p62 = scmp.eq.s32.totalorder %s10, 0
    %p63 = por %p61, %p62
    %p64 = scmp.ne.s32.totalorder %s53, %s56
    %p65 = scmp.eq.s32.totalorder %s15, 1
    %p66 = por %p64, %p65
    %p67 = scmp.ne.s32.totalorder %s56, %s57
    %p68 = scmp.eq.s32.totalorder %s15, 0
    %p69 = por %p67, %p68
    %p70 = scmp.ne.s32.totalorder %s56, %s57
    %p71 = scmp.eq.s32.totalorder %s16, 1
    %p72 = por %p70, %p71
    %p74 = scmp.ne.s32.totalorder %s57, %s73
    %p75 = scmp.eq.s32.totalorder %s16, 0
    %p76 = por %p74, %p75
    %s77 = ssub.s32 %s17, %s29
    %s78 = ssub.s32 %s18, %s25
    %s79 = sor.u32 %s77, %s78
    %p80 = scmp.eq.s32.totalorder %s79, 0
    %s82 = sadd.s32 %s81, 1
    %s83 = scalar_select %p80, %s81, %s82
    %p86 = pneg %p80
    %p87 = scmp.eq.s32.totalorder %s10, 1
    %p88 = por %p86, %p87
    %p89 = scmp.ne.s32.totalorder %s81, %s84
    %p90 = scmp.eq.s32.totalorder %s10, 0
    %p91 = por %p89, %p90
    %p92 = scmp.ne.s32.totalorder %s81, %s84
    %p93 = scmp.eq.s32.totalorder %s15, 1
    %p94 = por %p92, %p93
    %p95 = scmp.ne.s32.totalorder %s84, %s85
    %p96 = scmp.eq.s32.totalorder %s15, 0
    %p97 = por %p95, %p96
    %p98 = scmp.ne.s32.totalorder %s84, %s85
    %p99 = scmp.eq.s32.totalorder %s16, 1
    %p100 = por %p98, %p99
    %p102 = scmp.ne.s32.totalorder %s85, %s101
    %p103 = scmp.eq.s32.totalorder %s16, 0
    %p104 = por %p102, %p103
    %s105 = ssub.s32 %s17, %s29
    %s106 = ssub.s32 %s18, %s25
    %s107 = sor.u32 %s105, %s106
    %p108 = scmp.eq.s32.totalorder %s107, 0
    %s110 = sadd.s32 %s109, 1
    %s111 = scalar_select %p108, %s109, %s110
    %p114 = pneg %p108
    %p115 = scmp.eq.s32.totalorder %s10, 1
    %p116 = por %p114, %p115
    %p117 = scmp.ne.s32.totalorder %s109, %s112
    %p118 = scmp.eq.s32.totalorder %s10, 0
    %p119 = por %p117, %p118
    %p120 = scmp.ne.s32.totalorder %s109, %s112
    %p121 = scmp.eq.s32.totalorder %s15, 1
    %p122 = por %p120, %p121
    %p123 = scmp.ne.s32.totalorder %s112, %s113
    %p124 = scmp.eq.s32.totalorder %s15, 0
    %p125 = por %p123, %p124
    %p126 = scmp.ne.s32.totalorder %s112, %s113
    %p127 = scmp.eq.s32.totalorder %s16, 1
    %p128 = por %p126, %p127
    %p130 = scmp.ne.s32.totalorder %s113, %s129
    %p131 = scmp.eq.s32.totalorder %s16, 0
    %p132 = por %p130, %p131
    %p133 = scmp.le.s32.totalorder 1, %s10
    %p134 = scmp.lt.s32.totalorder %s10, 3
    %p135 = pnand %p133, %p134
    %p136 = pneg %p135
    // Predicated region
    $region9: #{channel_attention_module.3} parent=5 // pred_check
      _
    $region10: #{channel_attention_module.3} parent=5 // pred_check_branch
      %138 = sbr.rel (%p135) target = $region12
    $region11: #{channel_attention_module.3} parent=5 // pred_region
      %s139 = ssub.s32 %s10, 1
      // Predicated region
      $region13: #{channel_attention_module.3} parent=11 // pred_check
        %p140 = pneg %p43
      $region14: #{channel_attention_module.3} parent=11 // pred_check_branch
        %142 = sbr.rel (%p140) target = $region16
      $region15: #{channel_attention_module.3} parent=11 // pred_region
        _
      $region16: #{channel_attention_module.3} parent=11 // pred_fallthru
        _
    $region12: #{channel_attention_module.3} parent=5 // pred_fallthru
      _
    %p143 = scmp.lt.s32.totalorder %s10, 2
    // Predicated region
    $region17: #{channel_attention_module.3} parent=5 // pred_check
      %p144 = pneg %p143
    $region18: #{channel_attention_module.3} parent=5 // pred_check_branch
      %146 = sbr.rel (%p144) target = $region20
    $region19: #{channel_attention_module.3} parent=5 // pred_region
      // Predicated region
      $region21: #{channel_attention_module.3} parent=19 // pred_check
        %p147 = pneg %p63
      $region22: #{channel_attention_module.3} parent=19 // pred_check_branch
        %149 = sbr.rel (%p147) target = $region24
      $region23: #{channel_attention_module.3} parent=19 // pred_region
        %p150 = scmp.lt.s32.totalorder %s17, 1
        %s151 = scalar_select %p150, %s17, 1
        %s152 = smul.addr %s151, 2
        %s153 = scalar_lea.vmem %s1, %s152
      $region24: #{channel_attention_module.3} parent=19 // pred_fallthru
        _
      // Predicated region
      $region25: #{channel_attention_module.3} parent=19 // pred_check
        %p154 = pneg %p91
      $region26: #{channel_attention_module.3} parent=19 // pred_check_branch
        %156 = sbr.rel (%p154) target = $region28
      $region27: #{channel_attention_module.3} parent=19 // pred_region
        %s157 = smul.u32 2, %s18
        %p158 = scmp.lt.s32.totalorder %s17, 1
        %s159 = scalar_select %p158, %s17, 1
        %p160 = scmp.lt.s32.totalorder %s157, 1
        %s161 = scalar_select %p160, %s157, 1
        %s162 = smul.addr %s159, 2
        %s163 = sadd.s32 %s161, %s162
        %s164 = smul.addr %s163, 4
        %s165 = scalar_lea.vmem %s2, %s164
        %s166 = smul.u32 2, %s18
      $region28: #{channel_attention_module.3} parent=19 // pred_fallthru
        _
    $region20: #{channel_attention_module.3} parent=5 // pred_fallthru
      _
    %p167 = scmp.le.s32.totalorder 1, %s10
    %p168 = scmp.lt.s32.totalorder %s10, 3
    %p169 = pnand %p167, %p168
    %p170 = pneg %p169
    // Predicated region
    $region29: #{channel_attention_module.3} parent=5 // pred_check
      _
    $region30: #{channel_attention_module.3} parent=5 // pred_check_branch
      %172 = sbr.rel (%p169) target = $region32
    $region31: #{channel_attention_module.3} parent=5 // pred_region
      %s173 = ssub.s32 %s10, 1
      %p174 = pneg %p43
      %p175 = pneg %p40
      %p176 = scmp.lt.s32.totalorder %s19, 1
      %s177 = scalar_select %p176, %s19, 1
      %s178 = smul.addr %s177, 2
      %s179 = scalar_lea.vmem %s1, %s178
      %p180 = pneg %p69
      %p181 = pneg %p66
      %s182 = smul.u32 2, %s20
      %p183 = scmp.lt.s32.totalorder %s19, 1
      %s184 = scalar_select %p183, %s19, 1
      %p185 = scmp.lt.s32.totalorder %s182, 1
      %s186 = scalar_select %p185, %s182, 1
      %s187 = smul.addr %s184, 2
      %s188 = sadd.s32 %s186, %s187
      %s189 = smul.addr %s188, 4
      %s190 = scalar_lea.vmem %s2, %s189
      %p191 = pneg %p97
      %p192 = pneg %p94
      %p193 = pneg %p125
      %p194 = pneg %p122
      %s195 = smul.u32 2, %s20
      %p196 = scmp.lt.s32.totalorder %s19, 1
      %s197 = scalar_select %p196, %s19, 1
      %p198 = scmp.lt.s32.totalorder %s195, 1
      %s199 = scalar_select %p198, %s195, 1
      %s200 = smul.addr %s197, 2
      %s201 = sadd.s32 %s199, %s200
      %s202 = smul.addr %s201, 4
      %s203 = scalar_lea.vmem %s3, %s202
      %p204 = scmp.lt.s32.totalorder %s19, 1
      %s205 = scalar_select %p204, %s19, 1
      %s206 = smul.addr %s205, 2
      %s207 = scalar_lea.vmem %s1, %s206
      %s208 = smul.u32 2, %s20
      %p209 = scmp.lt.s32.totalorder %s19, 1
      %s210 = scalar_select %p209, %s19, 1
      %p211 = scmp.lt.s32.totalorder %s208, 1
      %s212 = scalar_select %p211, %s208, 1
      %s213 = smul.addr %s210, 2
      %s214 = sadd.s32 %s212, %s213
      %s215 = smul.addr %s214, 4
      %s216 = scalar_lea.vmem %s2, %s215
      %s217 = smul.u32 2, %s20
      %s218 = smul.u32 2, %s20
      %p219 = scmp.lt.s32.totalorder %s19, 1
      %s220 = scalar_select %p219, %s19, 1
      %p221 = scmp.lt.s32.totalorder %s218, 1
      %s222 = scalar_select %p221, %s218, 1
      %s223 = smul.addr %s220, 2
      %s224 = sadd.s32 %s222, %s223
      %s225 = smul.addr %s224, 4
      %s226 = scalar_lea.vmem %s3, %s225
      %s227 = smul.u32 2, %s20
      %v229 = vld [vmem:[%s216] sm:$0xff]
      %v230 = vld [vmem:[%s207] sm:$0x3]
      %232 = vst [vmem:[#allocation1] ss:$2 sm:$0xff] %v229
      %v233 = vld.sshfl [vmem:[#allocation1] sm:$0xff pattern:$0x75316420]
      %v234 = vld.sshfl [vmem:[#allocation1 + $0x8] sm:$0xff pattern:$0x75316420]
      %v237 = vpack.c.bf16 %v233, %v233
      %v238 = vpack.c.bf16 %v234, %v234
      %vm239 = vcmask 31744
      %v241 = vsel %vm239, %v230, 0
      %vm243 = vcmask 1041408
      %v245 = vsel %vm243, %v237, 0
      %v248 = vsel %vm243, %v238, 0
      %250 = vmatpush.bf16.msra.mxu0 0
      %251 = vmatpush.bf16.msra.mxu0 0
      %252 = vmatpush.bf16.msra.mxu0 0
      %253 = vmatpush.bf16.msra.mxu0 0
      %254 = vmatpush.bf16.msra.mxu0 0
      %255 = vmatpush.bf16.msra.mxu0 0
      %256 = vmatpush.bf16.msra.mxu0 0
      %257 = vmatpush.bf16.msra.mxu0 %v245
      %258 = vmatmul.bf16.gmra.mxu0 %v241
      %v259 = vpop.f32.mrf.mxu0
      %v260 = vadd.f32 0.0, %v259
      %v261 = vpop.f32.mrf.mxu0
      %262 = vdwg.mxu0
      %263 = vmatpush.bf16.msra.mxu0 0
      %264 = vmatpush.bf16.msra.mxu0 0
      %265 = vmatpush.bf16.msra.mxu0 0
      %266 = vmatpush.bf16.msra.mxu0 0
      %267 = vmatpush.bf16.msra.mxu0 0
      %268 = vmatpush.bf16.msra.mxu0 0
      %269 = vmatpush.bf16.msra.mxu0 0
      %270 = vmatpush.bf16.msra.mxu0 %v248
      %271 = vmatmul.bf16.gmra.mxu0 %v241
      %v272 = vpop.f32.mrf.mxu0
      %v273 = vadd.f32 0.0, %v272
      %v274 = vpop.f32.mrf.mxu0
      %275 = vdwg.mxu0
      %s276 = sld [smem:[#allocation2]]
      %v277 = vstv %s276
      %v278 = vmul.f32 %v277, %v260
      %v279 = vmul.f32 %v277, %v273
      %280 = vst [vmem:[#allocation1] ss:$2 sm:$0xff] %v229
      %v281 = vld.sshfl [vmem:[#allocation1] sm:$0xff pattern:$0x75316420]
      %v282 = vld.sshfl [vmem:[#allocation1 + $0x8] sm:$0xff pattern:$0x75316420]
      %v285 = vadd.f32 %v278, %v281
      %v286 = vadd.f32 %v279, %v282
      %v289 = vrot.slane %v286, 4
      %vm290 = vcmask 1043456
      %v291 = vsel %vm290, %v285, %v289
      %293 = vst [vmem:[%s226] sm:$0xff] %v291
      %s294 = smul.u32 2, %s20
      %p295 = scmp.lt.s32.totalorder %s19, 1
      %s296 = scalar_select %p295, %s19, 1
      %p297 = scmp.lt.s32.totalorder %s294, 1
      %s298 = scalar_select %p297, %s294, 1
      %s299 = smul.addr %s296, 2
      %s300 = sadd.s32 %s298, %s299
      %s301 = smul.addr %s300, 4
      %s302 = scalar_lea.vmem %s3, %s301
      // Predicated region
      $region33: #{channel_attention_module.3} parent=31 // pred_check
        %p303 = pneg %p122
      $region34: #{channel_attention_module.3} parent=31 // pred_check_branch
        %305 = sbr.rel (%p303) target = $region36
      $region35: #{channel_attention_module.3} parent=31 // pred_region
        %s306 = smul.u32 2, %s20
      $region36: #{channel_attention_module.3} parent=31 // pred_fallthru
        _
    $region32: #{channel_attention_module.3} parent=5 // pred_fallthru
      _
    %p307 = scmp.le.s32.totalorder 2, %s10
    // Predicated region
    $region37: #{channel_attention_module.3} parent=5 // pred_check
      %p308 = pneg %p307
    $region38: #{channel_attention_module.3} parent=5 // pred_check_branch
      %310 = sbr.rel (%p308) target = $region40
    $region39: #{channel_attention_module.3} parent=5 // pred_region
      %s311 = ssub.s32 %s10, 2
      // Predicated region
      $region41: #{channel_attention_module.3} parent=39 // pred_check
        %p312 = pneg %p128
      $region42: #{channel_attention_module.3} parent=39 // pred_check_branch
        %314 = sbr.rel (%p312) target = $region44
      $region43: #{channel_attention_module.3} parent=39 // pred_region
        %s315 = smul.u32 2, %s22
        %p316 = scmp.lt.s32.totalorder %s21, 1
        %s317 = scalar_select %p316, %s21, 1
        %p318 = scmp.lt.s32.totalorder %s315, 1
        %s319 = scalar_select %p318, %s315, 1
        %s320 = smul.addr %s317, 2
        %s321 = sadd.s32 %s319, %s320
        %s322 = smul.addr %s321, 4
        %s323 = scalar_lea.vmem %s3, %s322
      $region44: #{channel_attention_module.3} parent=39 // pred_fallthru
        _
    $region40: #{channel_attention_module.3} parent=5 // pred_fallthru
      _
  $region6: #{channel_attention_module.3} parent=0 // loop_footer
    %s14 = sadd.s32 1, %s10
  $region7: #{channel_attention_module.3} parent=0 // loop_footer_branch
    %9 = sbr.rel target = $region3
  $region8: #{channel_attention_module.3} parent=0 // loop_exit
    _

</llo_original>
